<compile_context>
chip_gen: v7x
topology: tpu7x:2x2x1
jax: 0.10.0
libtpu: 0.0.40
codegen_flags: <defaults>
</compile_context>

<pallas_src>
import math

import jax
import jax.numpy as jnp
from jax.experimental import pallas as pl
from jax.experimental.pallas import tpu as pltpu

NEG_SLOPE = 0.1   # LeakyReLU negative slope
LANE = 128        # TPU lane width
SUBLANE = 8       # f32 sublane count
MAX_TM = 2048     # row-tile cap (portable across v5e/v6e/v7x VMEM budgets)


def _round_up(x, m):
    return ((x + m - 1) // m) * m


def _mlp_kernel(x_ref,
                w1_ref, b1_ref,
                w2_ref, b2_ref,
                w3_ref, b3_ref,
                o_ref):
    # x arrives as (tm, input_dim) f32; cast to bf16 in-register (free VPU work,
    # Mosaic handles the small K dim in-register, no HBM padding cost).
    x = x_ref[...].astype(jnp.bfloat16)

    # --- layer 1: Linear (BN folded into W/b) + LeakyReLU(0.1); Dropout = identity (eval) ---
    h = jnp.dot(x, w1_ref[...], preferred_element_type=jnp.float32)
    h = h + b1_ref[...]
    h = jnp.where(h >= 0, h, NEG_SLOPE * h)

    # --- layer 2: Linear (BN folded) + LeakyReLU(0.1); Dropout = identity (eval) ---
    h = jnp.dot(h.astype(w2_ref.dtype), w2_ref[...], preferred_element_type=jnp.float32)
    h = h + b2_ref[...]
    h = jnp.where(h >= 0, h, NEG_SLOPE * h)

    # --- layer 3: Linear (logits), narrow (tm, out_dim) store ---
    o = jnp.dot(h.astype(w3_ref.dtype), w3_ref[...], preferred_element_type=jnp.float32)
    o_ref[...] = (o + b3_ref[...]).astype(o_ref.dtype)


def init_params(key, input_dim, hidden_dim, output_dim):
    """nn.Linear default init U(-1/sqrt(fan_in), 1/sqrt(fan_in));
    BatchNorm1d: gamma=1, beta=0, running_mean=0, running_var=1."""
    keys = jax.random.split(key, 6)

    def linear(kw, kb, fan_in, fan_out):
        bound = 1.0 / math.sqrt(fan_in)
        w = jax.random.uniform(kw, (fan_in, fan_out), jnp.float32, -bound, bound)
        b = jax.random.uniform(kb, (fan_out,), jnp.float32, -bound, bound)
        return w, b

    w1, b1 = linear(keys[0], keys[1], input_dim, hidden_dim)
    w2, b2 = linear(keys[2], keys[3], hidden_dim, hidden_dim)
    w3, b3 = linear(keys[4], keys[5], hidden_dim, output_dim)

    def bn_init():
        return dict(
            gamma=jnp.ones((hidden_dim,), jnp.float32),
            beta=jnp.zeros((hidden_dim,), jnp.float32),
            mean=jnp.zeros((hidden_dim,), jnp.float32),
            var=jnp.ones((hidden_dim,), jnp.float32),
        )

    return {
        "w1": w1, "b1": b1, "bn1": bn_init(),
        "w2": w2, "b2": b2, "bn2": bn_init(),
        "w3": w3, "b3": b3,
        "dims": (input_dim, hidden_dim, output_dim),
    }


def prepare_params(params, eps=1e-5):
    """Fold eval-mode BN into the Linear weights/biases, zero-pad only the hidden
    feature dim to 128 lanes, and cast weights to bf16 for the MXU.
    Input and output feature dims are left un-padded (they equal the full array
    dims in their BlockSpecs, so no lane padding is required)."""
    input_dim, hidden_dim, output_dim = params["dims"]
    hid_pad = _round_up(hidden_dim, LANE)

    def fold(w, b, bn):
        scale = bn["gamma"] / jnp.sqrt(bn["var"] + eps)     # (out,)
        shift = bn["beta"] - bn["mean"] * scale
        return w * scale[None, :], b * scale + shift

    w1, b1 = fold(params["w1"], params["b1"], params["bn1"])
    w2, b2 = fold(params["w2"], params["b2"], params["bn2"])
    w3, b3 = params["w3"], params["b3"]

    def pad_w(w, rows, cols):
        r, c = w.shape
        return jnp.pad(w, ((0, rows - r), (0, cols - c))).astype(jnp.bfloat16)

    def pad_b(b, cols):
        return jnp.pad(b[None, :], ((0, 0), (0, cols - b.shape[0]))).astype(jnp.float32)

    return {
        # w1: (input_dim, hid_pad) -- no row padding (input stays un-padded in HBM).
        "w1": pad_w(w1, input_dim, hid_pad), "b1": pad_b(b1, hid_pad),
        "w2": pad_w(w2, hid_pad, hid_pad),   "b2": pad_b(b2, hid_pad),
        # w3: pad rows to hid_pad, keep columns narrow at output_dim.
        "w3": pad_w(w3, hid_pad, output_dim), "b3": pad_b(b3, output_dim),
        "in_dim": input_dim, "out_dim": output_dim, "hid_pad": hid_pad,
    }


def mlp_forward(x, prep):
    """x: (N, input_dim) float32 -> logits (N, output_dim) float32."""
    n, in_dim = x.shape
    hid_pad = prep["hid_pad"]
    out_dim = prep["out_dim"]

    # Row tile: multiple of 8 sublanes, capped at 2048.  Large tiles amortize the
    # ~0.35 us per-grid-step overhead; at tm=2048 the double-buffered x/out blocks
    # plus the two (tm, 128) f32 intermediates stay under ~4 MiB -> safe on the
    # 64 MiB v7x VMEM as well as 128 MiB v5e/v6e.
    n8 = _round_up(max(n, SUBLANE), SUBLANE)
    tm = min(MAX_TM, n8)
    # Prefer >= 2 grid steps so ("parallel",) can shard tiles across both v7x TensorCores.
    if tm == n8 and n8 >= 2 * SUBLANE:
        tm = _round_up(pl.cdiv(n8, 2), SUBLANE)
    n_pad = _round_up(n, tm)

    # Only row padding (zeros) so every tile is full; no column padding of x.
    x_p = x if n_pad == n else jnp.pad(x, ((0, n_pad - n), (0, 0)))

    weights = (prep["w1"], prep["b1"], prep["w2"], prep["b2"], prep["w3"], prep["b3"])

    grid = (n_pad // tm,)

    # x block: last dim equals the full array dim (in_dim) -> (8,128) rule satisfied
    # without padding the input columns to 128.
    in_specs = [pl.BlockSpec((tm, in_dim), lambda i: (i, 0))]
    # Weights/biases: whole-array blocks, constant index_map -> VMEM-resident; Pallas
    # skips the re-DMA when the block index does not change across grid steps.
    in_specs += [pl.BlockSpec(w.shape, lambda i: (0, 0)) for w in weights]
    # Narrow output block: 16 B/row instead of 512 B/row lane-padded f32.
    out_spec = pl.BlockSpec((tm, out_dim), lambda i: (i, 0))

    flops = 2 * n_pad * (in_dim * hid_pad + hid_pad * hid_pad + hid_pad * out_dim)
    bytes_accessed = (x_p.size * x_p.dtype.itemsize
                      + sum(w.size * w.dtype.itemsize for w in weights)
                      + n_pad * out_dim * 4)

    out = pl.pallas_call(
        _mlp_kernel,
        out_shape=jax.ShapeDtypeStruct((n_pad, out_dim), jnp.float32),
        grid=grid,
        in_specs=in_specs,
        out_specs=out_spec,
        compiler_params=pltpu.CompilerParams(
            dimension_semantics=("parallel",),
            vmem_limit_bytes=32 * 1024 * 1024,
        ),
        cost_estimate=pl.CostEstimate(
            flops=flops, transcendentals=0, bytes_accessed=bytes_accessed),
    )(x_p, *weights)

    return out if n_pad == n else out[:n]


def _reference(x, params, eps=1e-5):
    """Pure-f32 eval-mode reference (Linear -> BN(running stats) -> LeakyReLU -> [Dropout=id]) x2 -> Linear."""
    def bn(h, p):
        scale = p["gamma"] / jnp.sqrt(p["var"] + eps)
        shift = p["beta"] - p["mean"] * scale
        return h * scale[None, :] + shift[None, :]

    h = x @ params["w1"] + params["b1"][None, :]
    h = bn(h, params["bn1"])
    h = jnp.where(h >= 0, h, NEG_SLOPE * h)
    h = h @ params["w2"] + params["b2"][None, :]
    h = bn(h, params["bn2"])
    h = jnp.where(h >= 0, h, NEG_SLOPE * h)
    return h @ params["w3"] + params["b3"][None, :]


if __name__ == "__main__":
    key = jax.random.PRNGKey(0)
    k_x, k_p = jax.random.split(key)

    batch = 8
    input_dim = 16
    hidden_dim = 64
    output_dim = 4

    x = jax.random.normal(k_x, (batch, input_dim), jnp.float32)
    params = init_params(k_p, input_dim, hidden_dim, output_dim)
    prep = prepare_params(params)

    out = mlp_forward(x, prep)
    out = jax.block_until_ready(out)

    ref = _reference(x, params)
    assert out.shape == (batch, output_dim), out.shape
    # bf16 weights/activations on the MXU (f32 accumulation) -> loosened tolerance vs f32 ref.
    assert jnp.allclose(out, ref, atol=5e-2, rtol=5e-2), jnp.max(jnp.abs(out - ref))

    print("KERNEL_OK")
</pallas_src>

<mosaic_0001>
module attributes {stable_mosaic.version = 11 : i64} {
  func.func @_mlp_kernel(%arg0: i32, %arg1: memref<8x16xf32, #tpu.memory_space<vmem>>, %arg2: memref<16x128xbf16, #tpu.memory_space<vmem>>, %arg3: memref<1x128xf32, #tpu.memory_space<vmem>>, %arg4: memref<128x128xbf16, #tpu.memory_space<vmem>>, %arg5: memref<1x128xf32, #tpu.memory_space<vmem>>, %arg6: memref<128x4xbf16, #tpu.memory_space<vmem>>, %arg7: memref<1x4xf32, #tpu.memory_space<vmem>>, %arg8: memref<8x4xf32, #tpu.memory_space<vmem>>) attributes {dimension_semantics = [#tpu.dimension_semantics<parallel>], iteration_bounds = array<i64: 1>, scalar_prefetch = 0 : i64, scratch_operands = 0 : i64, tpu.core_type = #tpu.core_type<tc>, window_params = [{transform_indices = @transform_0, window_bounds = array<i64: 8, 16>}, {pipeline_mode = #tpu.pipeline_mode<synchronous>, transform_indices = @transform_1, window_bounds = array<i64: 16, 128>}, {pipeline_mode = #tpu.pipeline_mode<synchronous>, transform_indices = @transform_2, window_bounds = array<i64: 1, 128>}, {pipeline_mode = #tpu.pipeline_mode<synchronous>, transform_indices = @transform_3, window_bounds = array<i64: 128, 128>}, {pipeline_mode = #tpu.pipeline_mode<synchronous>, transform_indices = @transform_4, window_bounds = array<i64: 1, 128>}, {pipeline_mode = #tpu.pipeline_mode<synchronous>, transform_indices = @transform_5, window_bounds = array<i64: 128, 4>}, {pipeline_mode = #tpu.pipeline_mode<synchronous>, transform_indices = @transform_6, window_bounds = array<i64: 1, 4>}, {transform_indices = @transform_7, window_bounds = array<i64: 8, 4>}]} {
    %c0 = arith.constant 0 : index
    %c0_0 = arith.constant 0 : index
    %0 = vector.load %arg1[%c0, %c0_0] : memref<8x16xf32, #tpu.memory_space<vmem>>, vector<8x16xf32>
    %1 = arith.truncf %0 : vector<8x16xf32> to vector<8x16xbf16>
    %c0_1 = arith.constant 0 : index
    %c0_2 = arith.constant 0 : index
    %2 = vector.load %arg2[%c0_1, %c0_2] : memref<16x128xbf16, #tpu.memory_space<vmem>>, vector<16x128xbf16>
    %cst = arith.constant dense<0.000000e+00> : vector<8x128xf32>
    %3 = tpu.matmul %1, %2, %cst {dimension_numbers = #tpu.dot_dimension_numbers<[1], [0], [0], [1], [0, 0, 1, 1], [], []>} : vector<8x16xbf16>, vector<16x128xbf16>, vector<8x128xf32> -> vector<8x128xf32>
    %c0_3 = arith.constant 0 : index
    %c0_4 = arith.constant 0 : index
    %4 = vector.load %arg3[%c0_3, %c0_4] : memref<1x128xf32, #tpu.memory_space<vmem>>, vector<1x128xf32>
    %5 = vector.broadcast %4 : vector<1x128xf32> to vector<8x128xf32>
    %6 = arith.addf %3, %5 : vector<8x128xf32>
    %cst_5 = arith.constant 0.000000e+00 : f32
    %7 = vector.broadcast %cst_5 : f32 to vector<8x128xf32>
    %8 = arith.cmpf oge, %6, %7 : vector<8x128xf32>
    %cst_6 = arith.constant 1.000000e-01 : f32
    %9 = vector.broadcast %cst_6 : f32 to vector<8x128xf32>
    %10 = arith.mulf %9, %6 : vector<8x128xf32>
    %11 = arith.select %8, %6, %10 : vector<8x128xi1>, vector<8x128xf32>
    %12 = arith.truncf %11 : vector<8x128xf32> to vector<8x128xbf16>
    %c0_7 = arith.constant 0 : index
    %c0_8 = arith.constant 0 : index
    %13 = vector.load %arg4[%c0_7, %c0_8] : memref<128x128xbf16, #tpu.memory_space<vmem>>, vector<128x128xbf16>
    %cst_9 = arith.constant dense<0.000000e+00> : vector<8x128xf32>
    %14 = tpu.matmul %12, %13, %cst_9 {dimension_numbers = #tpu.dot_dimension_numbers<[1], [0], [0], [1], [0, 0, 1, 1], [], []>} : vector<8x128xbf16>, vector<128x128xbf16>, vector<8x128xf32> -> vector<8x128xf32>
    %c0_10 = arith.constant 0 : index
    %c0_11 = arith.constant 0 : index
    %15 = vector.load %arg5[%c0_10, %c0_11] : memref<1x128xf32, #tpu.memory_space<vmem>>, vector<1x128xf32>
    %16 = vector.broadcast %15 : vector<1x128xf32> to vector<8x128xf32>
    %17 = arith.addf %14, %16 : vector<8x128xf32>
    %cst_12 = arith.constant 0.000000e+00 : f32
    %18 = vector.broadcast %cst_12 : f32 to vector<8x128xf32>
    %19 = arith.cmpf oge, %17, %18 : vector<8x128xf32>
    %cst_13 = arith.constant 1.000000e-01 : f32
    %20 = vector.broadcast %cst_13 : f32 to vector<8x128xf32>
    %21 = arith.mulf %20, %17 : vector<8x128xf32>
    %22 = arith.select %19, %17, %21 : vector<8x128xi1>, vector<8x128xf32>
    %23 = arith.truncf %22 : vector<8x128xf32> to vector<8x128xbf16>
    %c0_14 = arith.constant 0 : index
    %c0_15 = arith.constant 0 : index
    %24 = vector.load %arg6[%c0_14, %c0_15] : memref<128x4xbf16, #tpu.memory_space<vmem>>, vector<128x4xbf16>
    %cst_16 = arith.constant dense<0.000000e+00> : vector<8x4xf32>
    %25 = tpu.matmul %23, %24, %cst_16 {dimension_numbers = #tpu.dot_dimension_numbers<[1], [0], [0], [1], [0, 0, 1, 1], [], []>} : vector<8x128xbf16>, vector<128x4xbf16>, vector<8x4xf32> -> vector<8x4xf32>
    %c0_17 = arith.constant 0 : index
    %c0_18 = arith.constant 0 : index
    %26 = vector.load %arg7[%c0_17, %c0_18] : memref<1x4xf32, #tpu.memory_space<vmem>>, vector<1x4xf32>
    %27 = vector.broadcast %26 : vector<1x4xf32> to vector<8x4xf32>
    %28 = arith.addf %25, %27 : vector<8x4xf32>
    %c0_19 = arith.constant 0 : index
    %c0_20 = arith.constant 0 : index
    %29 = vector.load %arg8[%c0_19, %c0_20] : memref<8x4xf32, #tpu.memory_space<vmem>>, vector<8x4xf32>
    tpu.vector_store %arg8[%c0_19, %c0_20], %28 {strides = array<i32>} : memref<8x4xf32, #tpu.memory_space<vmem>>, vector<8x4xf32>,
    return
  }
  func.func @transform_0(%arg0: i32) -> (i32, i32) {
    %c0_i32 = arith.constant 0 : i32
    %c0_i32_0 = arith.constant 0 : i32
    return %arg0, %c0_i32 : i32, i32
  }
  func.func @transform_1(%arg0: i32) -> (i32, i32) {
    %c0_i32 = arith.constant 0 : i32
    %c0_i32_0 = arith.constant 0 : i32
    %c0_i32_1 = arith.constant 0 : i32
    return %c0_i32, %c0_i32_0 : i32, i32
  }
  func.func @transform_2(%arg0: i32) -> (i32, i32) {
    %c0_i32 = arith.constant 0 : i32
    %c0_i32_0 = arith.constant 0 : i32
    %c0_i32_1 = arith.constant 0 : i32
    return %c0_i32, %c0_i32_0 : i32, i32
  }
  func.func @transform_3(%arg0: i32) -> (i32, i32) {
    %c0_i32 = arith.constant 0 : i32
    %c0_i32_0 = arith.constant 0 : i32
    %c0_i32_1 = arith.constant 0 : i32
    return %c0_i32, %c0_i32_0 : i32, i32
  }
  func.func @transform_4(%arg0: i32) -> (i32, i32) {
    %c0_i32 = arith.constant 0 : i32
    %c0_i32_0 = arith.constant 0 : i32
    %c0_i32_1 = arith.constant 0 : i32
    return %c0_i32, %c0_i32_0 : i32, i32
  }
  func.func @transform_5(%arg0: i32) -> (i32, i32) {
    %c0_i32 = arith.constant 0 : i32
    %c0_i32_0 = arith.constant 0 : i32
    %c0_i32_1 = arith.constant 0 : i32
    return %c0_i32, %c0_i32_0 : i32, i32
  }
  func.func @transform_6(%arg0: i32) -> (i32, i32) {
    %c0_i32 = arith.constant 0 : i32
    %c0_i32_0 = arith.constant 0 : i32
    %c0_i32_1 = arith.constant 0 : i32
    return %c0_i32, %c0_i32_0 : i32, i32
  }
  func.func @transform_7(%arg0: i32) -> (i32, i32) {
    %c0_i32 = arith.constant 0 : i32
    %c0_i32_0 = arith.constant 0 : i32
    return %arg0, %c0_i32 : i32, i32
  }
}

</mosaic_0001>

<llo_original>
// kernel: tpu_custom_call.1
$region0: #{tpu_custom_call.1}
  #allocation0 [shape = 'u32[]', space=smem, size = 0x4, offset = 0x4, fixed_abs, tag = 'smem constant byte address 0x4 - core index']
  #allocation1 [shape = 'u32[144,128]{1,0:T(1,128)}', space=vmem, size = 0x12000, scoped, tag = 'internal scratch']
  %s0 = inlined_call_operand.vmem [shape: f32[8,16], index: 0, kind: input, shape index: {}]
  %s1 = inlined_call_operand.hbm [shape: bf16[16,128], index: 1, kind: input, shape index: {}]
  %s2 = inlined_call_operand.vmem [shape: f32[1,128], index: 2, kind: input, shape index: {}]
  %s3 = inlined_call_operand.vmem [shape: bf16[128,128], index: 3, kind: input, shape index: {}]
  %s4 = inlined_call_operand.vmem [shape: f32[1,128], index: 4, kind: input, shape index: {}]
  %s5 = inlined_call_operand.vmem [shape: bf16[128,4], index: 5, kind: input, shape index: {}]
  %s6 = inlined_call_operand.vmem [shape: f32[1,4], index: 6, kind: input, shape index: {}]
  %s7 = inlined_call_operand.vmem [shape: f32[8,4], index: 7, kind: output, shape index: {}]
  %s8 = sld [smem:[#allocation0]]
  $region42: #{tpu_custom_call.1} parent=0
    _
  %s10 = ssub.s32 1, %s8
  %s11 = scalar_select 0, %s10, %s8
  $region1: #{tpu_custom_call.1} parent=0
    #allocation2 [shape = 'u8[4096]{0}', space=vmem, size = 0x1000, scoped, tag = 'input window, operand 1, single buffered']
    #allocation3 [shape = 's32[1]{0}', space=sflag, size = 0x4, scoped, tag = 'scoped memory for tpu_custom_call.1']
    %12 = vsyncpa [#allocation3], 0
    // Predicated region
    $region2: #{tpu_custom_call.1} parent=1 // pred_check
      _
    $region3: #{tpu_custom_call.1} parent=1 // pred_check_branch
      %14 = sbr.rel (0) target = $region5
    $region4: #{tpu_custom_call.1} parent=1 // pred_region
      _
    $region5: #{tpu_custom_call.1} parent=1 // pred_fallthru
      _
    // Predicated region
    $region6: #{tpu_custom_call.1} parent=1 // pred_check
      _
    $region7: #{tpu_custom_call.1} parent=1 // pred_check_branch
      %16 = sbr.rel (0) target = $region9
    $region8: #{tpu_custom_call.1} parent=1 // pred_region
      %s18 = ssub.s32 128, 128
      %19 = vsyncadd [#allocation3], %s18
      %s20 = sshll.u32 [#allocation2], 4
      %s21 = int_to_ptr.vmem [resolvable:$true] %s20
      %26 = dma.hbm_to_vmem [thread:$0]  %s1, 128, %s21, [#allocation3], 64, 64, 4
    $region9: #{tpu_custom_call.1} parent=1 // pred_fallthru
      _
    // Predicated region
    $region10: #{tpu_custom_call.1} parent=1 // pred_check
      _
    $region11: #{tpu_custom_call.1} parent=1 // pred_check_branch
      %28 = sbr.rel (0) target = $region13
    $region12: #{tpu_custom_call.1} parent=1 // pred_region
      _
    $region13: #{tpu_custom_call.1} parent=1 // pred_fallthru
      _
    // Predicated region
    $region14: #{tpu_custom_call.1} parent=1 // pred_check
      _
    $region15: #{tpu_custom_call.1} parent=1 // pred_check_branch
      %30 = sbr.rel (0) target = $region17
    $region16: #{tpu_custom_call.1} parent=1 // pred_region
      _
    $region17: #{tpu_custom_call.1} parent=1 // pred_fallthru
      _
    // Predicated region
    $region18: #{tpu_custom_call.1} parent=1 // pred_check
      _
    $region19: #{tpu_custom_call.1} parent=1 // pred_check_branch
      %32 = sbr.rel (0) target = $region21
    $region20: #{tpu_custom_call.1} parent=1 // pred_region
      _
    $region21: #{tpu_custom_call.1} parent=1 // pred_fallthru
      _
    // Predicated region
    $region22: #{tpu_custom_call.1} parent=1 // pred_check
      _
    $region23: #{tpu_custom_call.1} parent=1 // pred_check_branch
      %34 = sbr.rel (0) target = $region25
    $region24: #{tpu_custom_call.1} parent=1 // pred_region
      _
    $region25: #{tpu_custom_call.1} parent=1 // pred_fallthru
      _
    // Predicated region
    $region26: #{tpu_custom_call.1} parent=1 // pred_check
      _
    $region27: #{tpu_custom_call.1} parent=1 // pred_check_branch
      %36 = sbr.rel (0) target = $region29
    $region28: #{tpu_custom_call.1} parent=1 // pred_region
      _
    $region29: #{tpu_custom_call.1} parent=1 // pred_fallthru
      _
    // Predicated region
    $region30: #{tpu_custom_call.1} parent=1 // pred_check
      _
    $region31: #{tpu_custom_call.1} parent=1 // pred_check_branch
      %38 = sbr.rel (0) target = $region33
    $region32: #{tpu_custom_call.1} parent=1 // pred_region
      %39 = dma.done [#allocation3], 128
    $region33: #{tpu_custom_call.1} parent=1 // pred_fallthru
      _
    %v41 = vld [vmem:[%s0] sm:$0xff]
    %v42 = vpack.c.bf16 %v41, %v41
    %v43 = vld [vmem:[#allocation2] sm:$0xf]
    %v44 = vld [vmem:[#allocation2 + $0x4] sm:$0xf]
    %v45 = vld [vmem:[%s2] sm:$0x1]
    %v47 = vlaneseq
    %v48 = vshrl.u32 %v47, 7
    %v49 = vsub.s32 0, %v48
    %v50 = vrot.slane %v45, %v49
    %v54 = vunpack.c.l.b16 %v43
    %v55 = vunpack.c.l.b16 %v44
    %v56 = vpack.c.b16 %v55, %v54
    %vm58 = vcmask 130048
    %v60 = vsel %vm58, %v42, 0
    %62 = vmatprep.subr.bf16.mxu0 0
    %63 = vmatpush1.bf16.msra.mxu0 %v56
    %64 = vmatprep.subr.bf16.mxu0 0
    %65 = vmatpush1.bf16.msra.mxu0 0
    %66 = vmatprep.subr.bf16.mxu0 0
    %67 = vmatpush1.bf16.msra.mxu0 0
    %68 = vmatprep.subr.bf16.mxu0 0
    %69 = vmatpush1.bf16.msra.mxu0 0
    %70 = vmatprep.subr.bf16.mxu0 0
    %71 = vmatpush1.bf16.msra.mxu0 0
    %72 = vmatprep.subr.bf16.mxu0 0
    %73 = vmatpush1.bf16.msra.mxu0 0
    %74 = vmatprep.subr.bf16.mxu0 0
    %75 = vmatpush1.bf16.msra.mxu0 0
    %76 = vmatprep.subr.bf16.mxu0 0
    %77 = vmatpush1.bf16.msra.mxu0 0
    %78 = vmatprep.subr.bf16.mxu0 0
    %79 = vmatpush1.bf16.msra.mxu0 0
    %80 = vmatprep.subr.bf16.mxu0 0
    %81 = vmatpush1.bf16.msra.mxu0 0
    %82 = vmatprep.subr.bf16.mxu0 0
    %83 = vmatpush1.bf16.msra.mxu0 0
    %84 = vmatprep.subr.bf16.mxu0 0
    %85 = vmatpush1.bf16.msra.mxu0 0
    %86 = vmatprep.subr.bf16.mxu0 0
    %87 = vmatpush1.bf16.msra.mxu0 0
    %88 = vmatprep.subr.bf16.mxu0 0
    %89 = vmatpush1.bf16.msra.mxu0 0
    %90 = vmatprep.subr.bf16.mxu0 0
    %91 = vmatpush1.bf16.msra.mxu0 0
    %92 = vmatprep.subr.bf16.mxu0 0
    %93 = vmatpush1.bf16.msra.mxu0 0
    %94 = vmatprep.mubr.bf16.mxu0 0
    %95 = vmatmul.mubr.bf16.gmra.mrb[0].mxu0 %v60
    %v96 = vpop.f32.mrb[0].mxu0
    %v97 = vadd.f32 %v50, %v96
    %v98 = vpop.f32.mrb[0].mxu0
    %v99 = vpop.f32.mrb[0].mxu0
    %v100 = vpop.f32.mrb[0].mxu0
    %101 = vdwg.mxu0
    %vm102 = vcmp.ge.f32.partialorder %v97, 0.0
    %v103 = vmul.f32 %v97, 0.1
    %v104 = vsel %vm102, %v97, %v103
    %v105 = vpack.c.bf16 %v104, %v104
    %v106 = vld [vmem:[%s3] sm:$0xf]
    %v107 = vld [vmem:[%s3 + $0x4] sm:$0xf]
    %v108 = vld [vmem:[%s3 + $0x8] sm:$0xf]
    %v109 = vld [vmem:[%s3 + $0xc] sm:$0xf]
    %v110 = vld [vmem:[%s3 + $0x10] sm:$0xf]
    %v111 = vld [vmem:[%s3 + $0x14] sm:$0xf]
    %v112 = vld [vmem:[%s3 + $0x18] sm:$0xf]
    %v113 = vld [vmem:[%s3 + $0x1c] sm:$0xf]
    %v114 = vld [vmem:[%s3 + $0x20] sm:$0xf]
    %v115 = vld [vmem:[%s3 + $0x24] sm:$0xf]
    %v116 = vld [vmem:[%s3 + $0x28] sm:$0xf]
    %v117 = vld [vmem:[%s3 + $0x2c] sm:$0xf]
    %v118 = vld [vmem:[%s3 + $0x30] sm:$0xf]
    %v119 = vld [vmem:[%s3 + $0x34] sm:$0xf]
    %v120 = vld [vmem:[%s3 + $0x38] sm:$0xf]
    %v121 = vld [vmem:[%s3 + $0x3c] sm:$0xf]
    %v122 = vld [vmem:[%s4] sm:$0x1]
    %v124 = vlaneseq
    %v125 = vshrl.u32 %v124, 7
    %v126 = vsub.s32 0, %v125
    %v127 = vrot.slane %v122, %v126
    %v145 = vunpack.c.l.b16 %v106
    %v146 = vunpack.c.l.b16 %v107
    %v147 = vunpack.c.l.b16 %v108
    %v148 = vunpack.c.l.b16 %v109
    %v149 = vunpack.c.l.b16 %v110
    %v150 = vunpack.c.l.b16 %v111
    %v151 = vunpack.c.l.b16 %v112
    %v152 = vunpack.c.l.b16 %v113
    %v153 = vunpack.c.l.b16 %v114
    %v154 = vunpack.c.l.b16 %v115
    %v155 = vunpack.c.l.b16 %v116
    %v156 = vunpack.c.l.b16 %v117
    %v157 = vunpack.c.l.b16 %v118
    %v158 = vunpack.c.l.b16 %v119
    %v159 = vunpack.c.l.b16 %v120
    %v160 = vunpack.c.l.b16 %v121
    %v161 = vpack.c.b16 %v146, %v145
    %v162 = vpack.c.b16 %v148, %v147
    %v163 = vpack.c.b16 %v150, %v149
    %v164 = vpack.c.b16 %v152, %v151
    %v165 = vpack.c.b16 %v154, %v153
    %v166 = vpack.c.b16 %v156, %v155
    %v167 = vpack.c.b16 %v158, %v157
    %v168 = vpack.c.b16 %v160, %v159
    %177 = vmatprep.subr.bf16.mxu0 0
    %178 = vmatpush1.bf16.msra.mxu0 %v161
    %179 = vmatprep.subr.bf16.mxu0 0
    %180 = vmatpush1.bf16.msra.mxu0 %v162
    %181 = vmatprep.subr.bf16.mxu0 0
    %182 = vmatpush1.bf16.msra.mxu0 %v163
    %183 = vmatprep.subr.bf16.mxu0 0
    %184 = vmatpush1.bf16.msra.mxu0 %v164
    %185 = vmatprep.subr.bf16.mxu0 0
    %186 = vmatpush1.bf16.msra.mxu0 %v165
    %187 = vmatprep.subr.bf16.mxu0 0
    %188 = vmatpush1.bf16.msra.mxu0 %v166
    %189 = vmatprep.subr.bf16.mxu0 0
    %190 = vmatpush1.bf16.msra.mxu0 %v167
    %191 = vmatprep.subr.bf16.mxu0 0
    %192 = vmatpush1.bf16.msra.mxu0 %v168
    %193 = vmatprep.subr.bf16.mxu0 0
    %194 = vmatpush1.bf16.msra.mxu0 0
    %195 = vmatprep.subr.bf16.mxu0 0
    %196 = vmatpush1.bf16.msra.mxu0 0
    %197 = vmatprep.subr.bf16.mxu0 0
    %198 = vmatpush1.bf16.msra.mxu0 0
    %199 = vmatprep.subr.bf16.mxu0 0
    %200 = vmatpush1.bf16.msra.mxu0 0
    %201 = vmatprep.subr.bf16.mxu0 0
    %202 = vmatpush1.bf16.msra.mxu0 0
    %203 = vmatprep.subr.bf16.mxu0 0
    %204 = vmatpush1.bf16.msra.mxu0 0
    %205 = vmatprep.subr.bf16.mxu0 0
    %206 = vmatpush1.bf16.msra.mxu0 0
    %207 = vmatprep.subr.bf16.mxu0 0
    %208 = vmatpush1.bf16.msra.mxu0 0
    %209 = vmatprep.mubr.bf16.mxu0 0
    %210 = vmatmul.mubr.bf16.gmra.mrb[0].mxu0 %v105
    %v211 = vpop.f32.mrb[0].mxu0
    %v212 = vadd.f32 %v127, %v211
    %v213 = vpop.f32.mrb[0].mxu0
    %v214 = vpop.f32.mrb[0].mxu0
    %v215 = vpop.f32.mrb[0].mxu0
    %216 = vdwg.mxu0
    %vm217 = vcmp.ge.f32.partialorder %v212, 0.0
    %v218 = vmul.f32 %v212, 0.1
    %v219 = vsel %vm217, %v212, %v218
    %v220 = vpack.c.bf16 %v219, %v219
    %v221 = vld [vmem:[%s5] sm:$0xf]
    %v222 = vld [vmem:[%s5 + $0x4] sm:$0xf]
    %v223 = vld [vmem:[%s5 + $0x8] sm:$0xf]
    %v224 = vld [vmem:[%s5 + $0xc] sm:$0xf]
    %v225 = vld [vmem:[%s5 + $0x10] sm:$0xf]
    %v226 = vld [vmem:[%s5 + $0x14] sm:$0xf]
    %v227 = vld [vmem:[%s5 + $0x18] sm:$0xf]
    %v228 = vld [vmem:[%s5 + $0x1c] sm:$0xf]
    %v229 = vld [vmem:[%s5 + $0x20] sm:$0xf]
    %v230 = vld [vmem:[%s5 + $0x24] sm:$0xf]
    %v231 = vld [vmem:[%s5 + $0x28] sm:$0xf]
    %v232 = vld [vmem:[%s5 + $0x2c] sm:$0xf]
    %v233 = vld [vmem:[%s5 + $0x30] sm:$0xf]
    %v234 = vld [vmem:[%s5 + $0x34] sm:$0xf]
    %v235 = vld [vmem:[%s5 + $0x38] sm:$0xf]
    %v236 = vld [vmem:[%s5 + $0x3c] sm:$0xf]
    %v237 = vld [vmem:[%s6] sm:$0x1]
    %v239 = vlaneseq
    %v240 = vshrl.u32 %v239, 7
    %v241 = vsub.s32 0, %v240
    %v242 = vrot.slane %v237, %v241
    %v260 = vunpack.c.l.b16 %v221
    %v261 = vunpack.c.l.b16 %v222
    %v262 = vunpack.c.l.b16 %v223
    %v263 = vunpack.c.l.b16 %v224
    %v264 = vunpack.c.l.b16 %v225
    %v265 = vunpack.c.l.b16 %v226
    %v266 = vunpack.c.l.b16 %v227
    %v267 = vunpack.c.l.b16 %v228
    %v268 = vunpack.c.l.b16 %v229
    %v269 = vunpack.c.l.b16 %v230
    %v270 = vunpack.c.l.b16 %v231
    %v271 = vunpack.c.l.b16 %v232
    %v272 = vunpack.c.l.b16 %v233
    %v273 = vunpack.c.l.b16 %v234
    %v274 = vunpack.c.l.b16 %v235
    %v275 = vunpack.c.l.b16 %v236
    %v276 = vpack.c.b16 %v261, %v260
    %v277 = vpack.c.b16 %v263, %v262
    %v278 = vpack.c.b16 %v265, %v264
    %v279 = vpack.c.b16 %v267, %v266
    %v280 = vpack.c.b16 %v269, %v268
    %v281 = vpack.c.b16 %v271, %v270
    %v282 = vpack.c.b16 %v273, %v272
    %v283 = vpack.c.b16 %v275, %v274
    %292 = vmatprep.subr.bf16.mxu0 0
    %293 = vmatpush1.bf16.msra.mxu0 %v276
    %294 = vmatprep.subr.bf16.mxu0 0
    %295 = vmatpush1.bf16.msra.mxu0 %v277
    %296 = vmatprep.subr.bf16.mxu0 0
    %297 = vmatpush1.bf16.msra.mxu0 %v278
    %298 = vmatprep.subr.bf16.mxu0 0
    %299 = vmatpush1.bf16.msra.mxu0 %v279
    %300 = vmatprep.subr.bf16.mxu0 0
    %301 = vmatpush1.bf16.msra.mxu0 %v280
    %302 = vmatprep.subr.bf16.mxu0 0
    %303 = vmatpush1.bf16.msra.mxu0 %v281
    %304 = vmatprep.subr.bf16.mxu0 0
    %305 = vmatpush1.bf16.msra.mxu0 %v282
    %306 = vmatprep.subr.bf16.mxu0 0
    %307 = vmatpush1.bf16.msra.mxu0 %v283
    %308 = vmatprep.subr.bf16.mxu0 0
    %309 = vmatpush1.bf16.msra.mxu0 0
    %310 = vmatprep.subr.bf16.mxu0 0
    %311 = vmatpush1.bf16.msra.mxu0 0
    %312 = vmatprep.subr.bf16.mxu0 0
    %313 = vmatpush1.bf16.msra.mxu0 0
    %314 = vmatprep.subr.bf16.mxu0 0
    %315 = vmatpush1.bf16.msra.mxu0 0
    %316 = vmatprep.subr.bf16.mxu0 0
    %317 = vmatpush1.bf16.msra.mxu0 0
    %318 = vmatprep.subr.bf16.mxu0 0
    %319 = vmatpush1.bf16.msra.mxu0 0
    %320 = vmatprep.subr.bf16.mxu0 0
    %321 = vmatpush1.bf16.msra.mxu0 0
    %322 = vmatprep.subr.bf16.mxu0 0
    %323 = vmatpush1.bf16.msra.mxu0 0
    %324 = vmatprep.mubr.bf16.mxu0 0
    %325 = vmatmul.mubr.bf16.gmra.mrb[0].mxu0 %v220
    %v326 = vpop.f32.mrb[0].mxu0
    %v327 = vadd.f32 %v242, %v326
    %v328 = vpop.f32.mrb[0].mxu0
    %v329 = vpop.f32.mrb[0].mxu0
    %v330 = vpop.f32.mrb[0].mxu0
    %331 = vdwg.mxu0
    %vm332 = vcmask 31744
    %333 = vst.msk [vmem:[%s7] sm:$0xff] %vm332, %v327
    // Predicated region
    $region34: #{tpu_custom_call.1} parent=1 // pred_check
      _
    $region35: #{tpu_custom_call.1} parent=1 // pred_check_branch
      %335 = sbr.rel (0) target = $region37
    $region36: #{tpu_custom_call.1} parent=1 // pred_region
      _
    $region37: #{tpu_custom_call.1} parent=1 // pred_fallthru
      _
    // Predicated region
    $region38: #{tpu_custom_call.1} parent=1 // pred_check
      _
    $region39: #{tpu_custom_call.1} parent=1 // pred_check_branch
      %337 = sbr.rel (0) target = $region41
    $region40: #{tpu_custom_call.1} parent=1 // pred_region
      _
    $region41: #{tpu_custom_call.1} parent=1 // pred_fallthru
      _
    %338 = vsyncpa [#allocation3], 1

</llo_original>
